<compile_context>
chip_gen: v5e
topology: v5e:2x2
jax: 0.10.0
libtpu: 0.0.40
codegen_flags: <defaults>
</compile_context>

<pallas_src>
from functools import partial

import jax
import jax.numpy as jnp
from jax.experimental import pallas as pl
from jax.experimental.pallas import tpu as pltpu


def _round_up(x: int, m: int) -> int:
    return ((x + m - 1) // m) * m


def _divisor_tile(extent: int, max_tile: int, unit: int) -> int:
    """Largest multiple-of-`unit` tile <= max_tile that exactly divides `extent`."""
    best = unit
    t = unit
    limit = min(extent, max_tile)
    while t <= limit:
        if extent % t == 0:
            best = t
        t += unit
    return best


# ----------------------------- Pallas kernel ---------------------------------
def _encoder_fwd_kernel(x_ref, w_ref, b_ref, o_ref):
    # o_ref is the f32 output block; its BlockSpec returns the same (i, j) block
    # for every k, so it stays resident in VMEM across the K reduction and acts
    # as the accumulator directly (no extra scratch buffer / copy pass).
    k = pl.program_id(2)

    @pl.when(k == 0)
    def _():
        o_ref[...] = jnp.zeros_like(o_ref)

    # bf16 x bf16 -> f32 accumulation on the MXU (inner loop is pure MXU + DMA).
    o_ref[...] += jnp.dot(
        x_ref[...], w_ref[...], preferred_element_type=jnp.float32
    )

    @pl.when(k == pl.num_programs(2) - 1)
    def _():
        # Epilogue only: bias add (VPU) + tanh (EUP) in f32, in place, once.
        o_ref[...] = jnp.tanh(o_ref[...] + b_ref[...])


@partial(jax.jit, static_argnames=("latent", "tk"))
def encoder_forward(x, w_pad, b_pad, *, latent, tk):
    """forward(x): [B, D] @ W + b -> tanh -> [B, latent] (f32 output).

    `w_pad` is the pre-padded (Kp, Np) bf16 weight and `b_pad` the (1, Np) f32
    bias (padding hoisted into __init__). Only the activations are (maybe)
    padded per call; the [B, latent] result is sliced back out.
    """
    B, D = x.shape
    Kp, Np = w_pad.shape
    assert b_pad.shape == (1, Np)
    assert Kp % tk == 0 and D <= Kp and latent <= Np

    # ---- tile plan (all shapes are static under jit) ----
    # M: minimize the number of M blocks first (each re-streams the full weight
    # matrix from HBM), then minimize padding within that block count.
    Mp_min = _round_up(B, 8)
    m_blocks = pl.cdiv(Mp_min, 512)
    tm = _round_up(pl.cdiv(Mp_min, m_blocks), 8)
    Mp = tm * m_blocks

    # N: full-ish lane-dense tile (unmasked vst), but keep >=2 blocks along a
    # "parallel" axis when M has only one block so v7x's 2 TensorCores both work.
    want_split = (m_blocks < 2) and (Np >= 256)
    tn = _divisor_tile(Np, min(512, Np // 2) if want_split else 512, 128)

    xp = x.astype(jnp.bfloat16)
    if (Mp, Kp) != (B, D):
        xp = jnp.pad(xp, ((0, Mp - B), (0, Kp - D)))

    grid = (Mp // tm, Np // tn, Kp // tk)

    cost = pl.CostEstimate(
        flops=2 * Mp * Kp * Np,
        transcendentals=Mp * Np,
        bytes_accessed=(Mp * Kp * 2) * (Np // tn)      # x re-read per N block
        + (Kp * Np * 2) * (Mp // tm)                   # W re-read per M block
        + Np * 4 * (Mp // tm)                          # bias
        + Mp * Np * 4,                                 # output
    )

    out = pl.pallas_call(
        _encoder_fwd_kernel,
        out_shape=jax.ShapeDtypeStruct((Mp, Np), jnp.float32),
        grid_spec=pltpu.PrefetchScalarGridSpec(
            num_scalar_prefetch=0,
            grid=grid,
            in_specs=[
                pl.BlockSpec((tm, tk), lambda i, j, k: (i, k)),  # x tile (bf16)
                pl.BlockSpec((tk, tn), lambda i, j, k: (k, j)),  # W tile (bf16)
                pl.BlockSpec((1, tn), lambda i, j, k: (0, j)),   # bias tile (f32)
            ],
            out_specs=pl.BlockSpec((tm, tn), lambda i, j, k: (i, j)),
        ),
        compiler_params=pltpu.CompilerParams(
            dimension_semantics=("parallel", "parallel", "arbitrary"),
            # Worst-case live footprint ~18 MiB (tm=tn=512, tk=4096, bf16 inputs
            # double-buffered + f32 output) — fits v7x's 64 MiB VMEM per TC.
            vmem_limit_bytes=48 * 1024 * 1024,
        ),
        cost_estimate=cost,
    )(xp, w_pad, b_pad)

    return out[:B, :latent]


# ----------------------------- Encoder wrapper --------------------------------
class PallasEncoder:
    """Concrete Encoder: deterministic synthetic params, Pallas forward pass."""

    def __init__(self, samples: int, channels: int, latent: int, seed: int = 0):
        self.samples = samples
        self.channels = channels
        self.latent = latent
        feat = samples * channels

        # Padded parameter layout chosen ONCE here (the forward kernel is
        # weight-HBM-bound; re-padding every call would ~3x the weight bytes).
        self.Kp = _round_up(feat, 128)
        self.Np = _round_up(latent, 128)
        # K tile: as deep as possible (<=4096) while exactly dividing Kp, so each
        # grid step ships a multi-MiB weight DMA (amortizes ~0.35 us step cost).
        self.tk = _divisor_tile(self.Kp, 4096, 128)

        k_w, k_b = jax.random.split(jax.random.PRNGKey(seed))
        # Deterministic synthetic parameters (no checkpoint loading).
        w_f32 = jax.random.normal(k_w, (feat, latent), jnp.float32) / jnp.sqrt(
            jnp.float32(feat)
        )
        b_f32 = jax.random.normal(k_b, (1, latent), jnp.float32) * 0.01
        # Stored pre-padded: bf16 weights (half the HBM bytes, 2x MXU rate),
        # f32 bias for the f32 epilogue.
        self.w = jnp.pad(
            w_f32.astype(jnp.bfloat16),
            ((0, self.Kp - feat), (0, self.Np - latent)),
        )
        self.b = jnp.pad(b_f32, ((0, 0), (0, self.Np - latent)))

    def prep(self, wf):
        # wf: [batch, samples, channels] -> [batch, samples*channels] (bf16 MXU feed)
        B = wf.shape[0]
        return wf.reshape(B, -1).astype(jnp.bfloat16)

    def forward(self, x):
        # x: [batch, features] -> [batch, latent]
        return encoder_forward(x, self.w, self.b, latent=self.latent, tk=self.tk)

    def encode(self, wf):
        # Encode waveform directly into latent (mirrors Encoder.encode).
        return self.forward(self.prep(wf))

    # TODO(synk): save/load in the PyTorch base are torch.save/torch.load file
    # I/O with silent failure handling — no Pallas/compute equivalent; omitted.


# ----------------------------- Demo / smoke test ------------------------------
if __name__ == "__main__":
    B, S, C, L = 2, 8, 4, 32
    key = jax.random.PRNGKey(0)
    wf = jax.random.normal(key, (B, S, C), jnp.float32)  # [batch, samples, channels]

    enc = PallasEncoder(samples=S, channels=C, latent=L, seed=0)
    z = enc.encode(wf)
    jax.block_until_ready(z)
    assert z.shape == (B, L)
    assert z.dtype == jnp.float32

    # Reference with identical numerics (bf16 operands, f32 accumulate/epilogue).
    x = enc.prep(wf)
    feat = S * C
    w_used = enc.w[:feat, :L]
    b_used = enc.b[:, :L]
    z_ref = jnp.tanh(
        jnp.dot(x, w_used, preferred_element_type=jnp.float32) + b_used
    )
    assert jnp.allclose(z, z_ref, atol=1e-4, rtol=1e-4)

    # Loose sanity check against full-f32 math (bf16 operand rounding only).
    z_f32 = jnp.tanh(
        jnp.dot(x.astype(jnp.float32), w_used.astype(jnp.float32)) + b_used
    )
    assert jnp.allclose(z, z_f32, atol=3e-2, rtol=3e-2)

    print("KERNEL_OK")
</pallas_src>

<mosaic_0001>
module attributes {stable_mosaic.version = 11 : i64} {
  func.func @_encoder_fwd_kernel(%arg0: i32, %arg1: i32, %arg2: i32, %arg3: memref<8x128xbf16, #tpu.memory_space<vmem>>, %arg4: memref<128x128xbf16, #tpu.memory_space<vmem>>, %arg5: memref<1x128xf32, #tpu.memory_space<vmem>>, %arg6: memref<8x128xf32, #tpu.memory_space<vmem>>) attributes {dimension_semantics = [#tpu.dimension_semantics<parallel>, #tpu.dimension_semantics<parallel>, #tpu.dimension_semantics<arbitrary>], iteration_bounds = array<i64: 1, 1, 1>, scalar_prefetch = 0 : i64, scratch_operands = 0 : i64, tpu.core_type = #tpu.core_type<tc>, window_params = [{transform_indices = @transform_0, window_bounds = array<i64: 8, 128>}, {transform_indices = @transform_1, window_bounds = array<i64: 128, 128>}, {transform_indices = @transform_2, window_bounds = array<i64: 1, 128>}, {transform_indices = @transform_3, window_bounds = array<i64: 8, 128>}]} {
    %c0_i32 = arith.constant 0 : i32
    %0 = arith.cmpi eq, %arg2, %c0_i32 : i32
    %1 = arith.extui %0 : i1 to i32
    %c0_i32_0 = arith.constant 0 : i32
    %2 = arith.cmpi ne, %1, %c0_i32_0 : i32
    scf.if %2 {
      %cst_10 = arith.constant 0.000000e+00 : f32
      %12 = vector.broadcast %cst_10 : f32 to vector<8x128xf32>
      %c0_11 = arith.constant 0 : index
      %c0_12 = arith.constant 0 : index
      %13 = vector.load %arg6[%c0_11, %c0_12] : memref<8x128xf32, #tpu.memory_space<vmem>>, vector<8x128xf32>
      tpu.vector_store %arg6[%c0_11, %c0_12], %12 {strides = array<i32>} : memref<8x128xf32, #tpu.memory_space<vmem>>, vector<8x128xf32>,
    } else {
    }
    %c0 = arith.constant 0 : index
    %c0_1 = arith.constant 0 : index
    %3 = vector.load %arg6[%c0, %c0_1] : memref<8x128xf32, #tpu.memory_space<vmem>>, vector<8x128xf32>
    %c0_2 = arith.constant 0 : index
    %c0_3 = arith.constant 0 : index
    %4 = vector.load %arg3[%c0_2, %c0_3] : memref<8x128xbf16, #tpu.memory_space<vmem>>, vector<8x128xbf16>
    %c0_4 = arith.constant 0 : index
    %c0_5 = arith.constant 0 : index
    %5 = vector.load %arg4[%c0_4, %c0_5] : memref<128x128xbf16, #tpu.memory_space<vmem>>, vector<128x128xbf16>
    %cst = arith.constant dense<0.000000e+00> : vector<8x128xf32>
    %6 = tpu.matmul %4, %5, %cst {dimension_numbers = #tpu.dot_dimension_numbers<[1], [0], [0], [1], [0, 0, 1, 1], [], []>} : vector<8x128xbf16>, vector<128x128xbf16>, vector<8x128xf32> -> vector<8x128xf32>
    %7 = arith.addf %3, %6 : vector<8x128xf32>
    %c0_6 = arith.constant 0 : index
    %c0_7 = arith.constant 0 : index
    %8 = vector.load %arg6[%c0_6, %c0_7] : memref<8x128xf32, #tpu.memory_space<vmem>>, vector<8x128xf32>
    tpu.vector_store %arg6[%c0_6, %c0_7], %7 {strides = array<i32>} : memref<8x128xf32, #tpu.memory_space<vmem>>, vector<8x128xf32>,
    %c0_i32_8 = arith.constant 0 : i32
    %9 = arith.cmpi eq, %arg2, %c0_i32_8 : i32
    %10 = arith.extui %9 : i1 to i32
    %c0_i32_9 = arith.constant 0 : i32
    %11 = arith.cmpi ne, %10, %c0_i32_9 : i32
    scf.if %11 {
      %c0_10 = arith.constant 0 : index
      %c0_11 = arith.constant 0 : index
      %12 = vector.load %arg6[%c0_10, %c0_11] : memref<8x128xf32, #tpu.memory_space<vmem>>, vector<8x128xf32>
      %c0_12 = arith.constant 0 : index
      %c0_13 = arith.constant 0 : index
      %13 = vector.load %arg5[%c0_12, %c0_13] : memref<1x128xf32, #tpu.memory_space<vmem>>, vector<1x128xf32>
      %14 = vector.broadcast %13 : vector<1x128xf32> to vector<8x128xf32>
      %15 = arith.addf %12, %14 : vector<8x128xf32>
      %16 = math.tanh %15 : vector<8x128xf32>
      %c0_14 = arith.constant 0 : index
      %c0_15 = arith.constant 0 : index
      %17 = vector.load %arg6[%c0_14, %c0_15] : memref<8x128xf32, #tpu.memory_space<vmem>>, vector<8x128xf32>
      tpu.vector_store %arg6[%c0_14, %c0_15], %16 {strides = array<i32>} : memref<8x128xf32, #tpu.memory_space<vmem>>, vector<8x128xf32>,
    } else {
    }
    return
  }
  func.func @transform_0(%arg0: i32, %arg1: i32, %arg2: i32) -> (i32, i32) {
    %c0_i32 = arith.constant 0 : i32
    return %arg0, %arg2 : i32, i32
  }
  func.func @transform_1(%arg0: i32, %arg1: i32, %arg2: i32) -> (i32, i32) {
    %c0_i32 = arith.constant 0 : i32
    return %arg2, %arg1 : i32, i32
  }
  func.func @transform_2(%arg0: i32, %arg1: i32, %arg2: i32) -> (i32, i32) {
    %c0_i32 = arith.constant 0 : i32
    %c0_i32_0 = arith.constant 0 : i32
    return %c0_i32, %arg1 : i32, i32
  }
  func.func @transform_3(%arg0: i32, %arg1: i32, %arg2: i32) -> (i32, i32) {
    %c0_i32 = arith.constant 0 : i32
    return %arg0, %arg1 : i32, i32
  }
}

</mosaic_0001>

<llo_original>
// kernel: encoder_forward.1
$region0: #{encoder_forward.1}
  #allocation0 [shape = 'u32[]', space=smem, size = 0x4, offset = 0x4, fixed_abs, tag = 'smem constant byte address 0x4 - core index']
  #allocation1 [shape = 'u32[72,128]{1,0:T(1,128)}', space=vmem, size = 0x9000, scoped, tag = 'internal scratch']
  %s0 = inlined_call_operand.vmem [shape: bf16[8,128], index: 0, kind: input, shape index: {}]
  %s1 = inlined_call_operand.hbm [shape: bf16[128,128], index: 1, kind: input, shape index: {}]
  %s2 = inlined_call_operand.vmem [shape: f32[1,128], index: 2, kind: input, shape index: {}]
  %s3 = inlined_call_operand.vmem [shape: f32[8,128], index: 3, kind: output, shape index: {}]
  %s4 = sld [smem:[#allocation0]]
  $region34: #{encoder_forward.1} parent=0
    _
  %s6 = ssub.s32 1, %s4
  %s7 = scalar_select 0, %s6, %s4
  $region1: #{encoder_forward.1} parent=0
    #allocation2 [shape = 'u8[32768]{0}', space=vmem, size = 0x8000, scoped, tag = 'input window, operand 1, single buffered']
    #allocation3 [shape = 's32[1]{0}', space=sflag, size = 0x4, scoped, tag = 'scoped memory for encoder_forward.1']
    %8 = vsyncpa [#allocation3], 0
    // Predicated region
    $region2: #{encoder_forward.1} parent=1 // pred_check
      _
    $region3: #{encoder_forward.1} parent=1 // pred_check_branch
      %10 = sbr.rel (0) target = $region5
    $region4: #{encoder_forward.1} parent=1 // pred_region
      _
    $region5: #{encoder_forward.1} parent=1 // pred_fallthru
      _
    // Predicated region
    $region6: #{encoder_forward.1} parent=1 // pred_check
      _
    $region7: #{encoder_forward.1} parent=1 // pred_check_branch
      %12 = sbr.rel (0) target = $region9
    $region8: #{encoder_forward.1} parent=1 // pred_region
      %14 = vsyncadd [#allocation3], 0
      %s15 = sshll.u32 %s1, 4
      %s16 = int_to_ptr.hbm [resolvable:$true] %s15
      %s17 = sshll.u32 [#allocation2], 4
      %s18 = int_to_ptr.vmem [resolvable:$true] %s17
      %23 = dma.hbm_to_vmem [thread:$0]  %s16, 1024, %s18, [#allocation3], 64, 64, 4
    $region9: #{encoder_forward.1} parent=1 // pred_fallthru
      _
    // Predicated region
    $region10: #{encoder_forward.1} parent=1 // pred_check
      _
    $region11: #{encoder_forward.1} parent=1 // pred_check_branch
      %25 = sbr.rel (0) target = $region13
    $region12: #{encoder_forward.1} parent=1 // pred_region
      _
    $region13: #{encoder_forward.1} parent=1 // pred_fallthru
      _
    // Predicated region
    $region14: #{encoder_forward.1} parent=1 // pred_check
      _
    $region15: #{encoder_forward.1} parent=1 // pred_check_branch
      %27 = sbr.rel (0) target = $region17
    $region16: #{encoder_forward.1} parent=1 // pred_region
      %29 = dma.done [#allocation3], 1024
    $region17: #{encoder_forward.1} parent=1 // pred_fallthru
      _
    %p30 = scmp.eq.s32.totalorder 0, 0
    // Predicated region
    $region18: #{encoder_forward.1} parent=1 // pred_check
      %p31 = pneg %p30
    $region19: #{encoder_forward.1} parent=1 // pred_check_branch
      %33 = sbr.rel (%p31) target = $region21
    $region20: #{encoder_forward.1} parent=1 // pred_region
      %34 = vst [vmem:[%s3] sm:$0xff] 0.0
    $region21: #{encoder_forward.1} parent=1 // pred_fallthru
      _
    %v35 = vld [vmem:[%s3] sm:$0xff]
    %v36 = vld [vmem:[%s0] sm:$0xf]
    %v37 = vld [vmem:[#allocation2] sm:$0xf]
    %v38 = vld [vmem:[#allocation2 + $0x4] sm:$0xf]
    %v39 = vld [vmem:[#allocation2 + $0x8] sm:$0xf]
    %v40 = vld [vmem:[#allocation2 + $0xc] sm:$0xf]
    %v41 = vld [vmem:[#allocation2 + $0x10] sm:$0xf]
    %v42 = vld [vmem:[#allocation2 + $0x14] sm:$0xf]
    %v43 = vld [vmem:[#allocation2 + $0x18] sm:$0xf]
    %v44 = vld [vmem:[#allocation2 + $0x1c] sm:$0xf]
    %v45 = vld [vmem:[#allocation2 + $0x20] sm:$0xf]
    %v46 = vld [vmem:[#allocation2 + $0x24] sm:$0xf]
    %v47 = vld [vmem:[#allocation2 + $0x28] sm:$0xf]
    %v48 = vld [vmem:[#allocation2 + $0x2c] sm:$0xf]
    %v49 = vld [vmem:[#allocation2 + $0x30] sm:$0xf]
    %v50 = vld [vmem:[#allocation2 + $0x34] sm:$0xf]
    %v51 = vld [vmem:[#allocation2 + $0x38] sm:$0xf]
    %v52 = vld [vmem:[#allocation2 + $0x3c] sm:$0xf]
    %v69 = vunpack.c.l.b16 %v37
    %v70 = vunpack.c.l.b16 %v38
    %v71 = vunpack.c.l.b16 %v39
    %v72 = vunpack.c.l.b16 %v40
    %v73 = vunpack.c.l.b16 %v41
    %v74 = vunpack.c.l.b16 %v42
    %v75 = vunpack.c.l.b16 %v43
    %v76 = vunpack.c.l.b16 %v44
    %v77 = vunpack.c.l.b16 %v45
    %v78 = vunpack.c.l.b16 %v46
    %v79 = vunpack.c.l.b16 %v47
    %v80 = vunpack.c.l.b16 %v48
    %v81 = vunpack.c.l.b16 %v49
    %v82 = vunpack.c.l.b16 %v50
    %v83 = vunpack.c.l.b16 %v51
    %v84 = vunpack.c.l.b16 %v52
    %v85 = vpack.c.b16 %v70, %v69
    %v86 = vpack.c.b16 %v72, %v71
    %v87 = vpack.c.b16 %v74, %v73
    %v88 = vpack.c.b16 %v76, %v75
    %v89 = vpack.c.b16 %v78, %v77
    %v90 = vpack.c.b16 %v80, %v79
    %v91 = vpack.c.b16 %v82, %v81
    %v92 = vpack.c.b16 %v84, %v83
    %101 = vmatpush.bf16.msra.mxu0 %v92
    %102 = vmatpush.bf16.msra.mxu0 %v91
    %103 = vmatpush.bf16.msra.mxu0 %v90
    %104 = vmatpush.bf16.msra.mxu0 %v89
    %105 = vmatpush.bf16.msra.mxu0 %v88
    %106 = vmatpush.bf16.msra.mxu0 %v87
    %107 = vmatpush.bf16.msra.mxu0 %v86
    %108 = vmatpush.bf16.msra.mxu0 %v85
    %109 = vmatmul.bf16.gmra.mxu0 %v36
    %v110 = vpop.f32.mrf.mxu0
    %v111 = vadd.f32 0.0, %v110
    %v112 = vpop.f32.mrf.mxu0
    %113 = vdwg.mxu0
    %v114 = vadd.f32 %v35, %v111
    %115 = vst [vmem:[%s3] sm:$0xff] %v114
    // Predicated region
    $region22: #{encoder_forward.1} parent=1 // pred_check
      %p116 = pneg %p30
    $region23: #{encoder_forward.1} parent=1 // pred_check_branch
      %118 = sbr.rel (%p116) target = $region25
    $region24: #{encoder_forward.1} parent=1 // pred_region
      %v119 = vld [vmem:[%s3] sm:$0xff]
      %v120 = vld [vmem:[%s2] sm:$0x1]
      %v122 = vperm.slane %v120, 0
      %v124 = vadd.f32 %v119, %v122
      %v125 = vtanh.pop %v124
      %126 = vst [vmem:[%s3] sm:$0xff] %v125
    $region25: #{encoder_forward.1} parent=1 // pred_fallthru
      _
    // Predicated region
    $region26: #{encoder_forward.1} parent=1 // pred_check
      _
    $region27: #{encoder_forward.1} parent=1 // pred_check_branch
      %128 = sbr.rel (0) target = $region29
    $region28: #{encoder_forward.1} parent=1 // pred_region
      _
    $region29: #{encoder_forward.1} parent=1 // pred_fallthru
      _
    // Predicated region
    $region30: #{encoder_forward.1} parent=1 // pred_check
      _
    $region31: #{encoder_forward.1} parent=1 // pred_check_branch
      %130 = sbr.rel (0) target = $region33
    $region32: #{encoder_forward.1} parent=1 // pred_region
      _
    $region33: #{encoder_forward.1} parent=1 // pred_fallthru
      _
    %131 = vsyncpa [#allocation3], 1

</llo_original>
